<compile_context>
chip_gen: v7x
topology: tpu7x:2x2x1
jax: 0.10.0
libtpu: 0.0.40
codegen_flags: <defaults>
</compile_context>

<pallas_src>
import jax
import jax.numpy as jnp
from jax.experimental import pallas as pl
from jax.experimental.pallas import tpu as pltpu

# ----------------------------- config ---------------------------------------
BATCH = 16                    # images per pallas_call
N_PATCHES = 8                 # patches per image
C, H, W = 4, 16, 16
IN_FEATS = C * H * W          # 1024
EMBED_DIM = 32
OUT_FEATS = 8
OUT_PAD = 128                 # lane-dense padded output width
LN_EPS = 1e-5


# ----------------------------- kernel ---------------------------------------
def patch_aggregator_kernel(x_ref, wb_ref, wfc_ref, bias_ref, out_ref):
    # x_ref   : (N_PATCHES, TB, IN_FEATS) bf16  patch-major batch tile
    # wb_ref  : (IN_FEATS, EMBED_DIM)     bf16  backbone weight (resident)
    # wfc_ref : (EMBED_DIM, OUT_PAD)      f32   fc weight, LN gamma folded, padded
    # bias_ref: (2, OUT_PAD)              f32   row0 = backbone bias, row1 = fused fc bias
    # out_ref : (TB, OUT_PAD)             f32
    tb = out_ref.shape[0]
    biases = bias_ref[...]
    bb = biases[0:1, :EMBED_DIM]          # (1, EMBED_DIM)
    bfc = biases[1:2, :]                  # (1, OUT_PAD)

    # Synthetic backbone: one bf16 MXU matmul over all N_PATCHES*TB patches (f32 acc) + ReLU.
    x = x_ref[...].reshape(N_PATCHES * tb, IN_FEATS)
    feats = jnp.dot(x, wb_ref[...], preferred_element_type=jnp.float32) + bb
    feats = jnp.maximum(feats, 0.0)                       # (N_PATCHES*TB, EMBED_DIM)

    # AdaptiveMaxPool1d(1): patch-major layout => each patch is a contiguous
    # (TB, EMBED_DIM) slab -> pure-VPU maximum tree, no strided XLU reduction.
    pooled = feats[0:tb, :]
    for p in range(1, N_PATCHES):
        pooled = jnp.maximum(pooled, feats[p * tb:(p + 1) * tb, :])

    # LayerNorm statistics (affine gamma/beta are folded into wfc/bias offline).
    mean = jnp.mean(pooled, axis=-1, keepdims=True)
    var = jnp.mean((pooled - mean) ** 2, axis=-1, keepdims=True)
    normed = (pooled - mean) * jax.lax.rsqrt(var + LN_EPS)

    # Final Linear (LN affine folded in); 128 output lanes -> unmasked stores.
    out_ref[...] = jnp.dot(normed, wfc_ref[...],
                           preferred_element_type=jnp.float32) + bfc


# ----------------------------- one-time parameter prep -----------------------
def prepare_params(wb, bb, gamma, beta, wfc, bfc):
    """Hoisted out of the per-call path: fold LN affine into fc, pad fc to 128
    lanes, pack the two bias vectors into one slab, cast backbone weight to bf16.

      (z*gamma + beta) @ wfc + bfc  ==  z @ (gamma[:,None]*wfc) + (beta@wfc + bfc)
    """
    wb_bf16 = wb.astype(jnp.bfloat16)
    wfc_eff = gamma.reshape(EMBED_DIM, 1) * wfc                        # (D, OUT)
    bfc_eff = beta.reshape(1, EMBED_DIM) @ wfc + bfc.reshape(1, OUT_FEATS)
    wfc_pad = jnp.zeros((EMBED_DIM, OUT_PAD), jnp.float32)
    wfc_pad = wfc_pad.at[:, :OUT_FEATS].set(wfc_eff)
    bias_pack = jnp.zeros((2, OUT_PAD), jnp.float32)
    bias_pack = bias_pack.at[0, :EMBED_DIM].set(bb.reshape(EMBED_DIM))
    bias_pack = bias_pack.at[1, :OUT_FEATS].set(bfc_eff.reshape(OUT_FEATS))
    return wb_bf16, wfc_pad, bias_pack


def _grid_config(batch):
    """Generation-aware batch tiling: 1 grid step on single-TC chips (v5e/v6e);
    2 core-parallel steps on v7x (2 TensorCores/chip)."""
    kind = ""
    try:
        kind = jax.devices()[0].device_kind.lower()
    except Exception:
        pass
    if "v7" in kind and batch % 2 == 0:
        return batch // 2, (pltpu.CORE_PARALLEL,)
    return batch, (pltpu.ARBITRARY,)


# ----------------------------- wrapper ---------------------------------------
def make_patch_aggregator(batch):
    """Builds a jitted callable: (x, wb_bf16, wfc_pad, bias_pack) -> (B, OUT_FEATS)."""
    tb, dim_sem = _grid_config(batch)
    assert batch % tb == 0
    grid = (batch // tb,)

    # VMEM budget: double-buffered bf16 activation tile + resident weights + headroom.
    x_tile_bytes = N_PATCHES * tb * IN_FEATS * 2
    vmem_limit = min(max(4 * x_tile_bytes + (4 << 20), 8 << 20), 64 << 20)

    call = pl.pallas_call(
        patch_aggregator_kernel,
        grid=grid,
        in_specs=[
            # batch-tiled, patch-major activations
            pl.BlockSpec((N_PATCHES, tb, IN_FEATS), lambda i: (0, i, 0)),
            # resident weights: constant block index -> DMA'd once, reused
            pl.BlockSpec((IN_FEATS, EMBED_DIM), lambda i: (0, 0)),
            pl.BlockSpec((EMBED_DIM, OUT_PAD), lambda i: (0, 0)),
            pl.BlockSpec((2, OUT_PAD), lambda i: (0, 0)),
        ],
        out_specs=pl.BlockSpec((tb, OUT_PAD), lambda i: (i, 0)),
        out_shape=jax.ShapeDtypeStruct((batch, OUT_PAD), jnp.float32),
        compiler_params=pltpu.CompilerParams(
            dimension_semantics=dim_sem,
            vmem_limit_bytes=vmem_limit),
    )

    @jax.jit
    def run(x, wb_bf16, wfc_pad, bias_pack):
        # (B, N_PATCHES, C, H, W) -> patch-major (N_PATCHES, B, IN_FEATS) bf16
        x_pm = (x.reshape(batch, N_PATCHES, IN_FEATS)
                 .transpose(1, 0, 2)
                 .astype(jnp.bfloat16))
        out_pad = call(x_pm, wb_bf16, wfc_pad, bias_pack)
        return out_pad[:, :OUT_FEATS]                    # strip lane padding

    return run


# ----------------------------- reference ------------------------------------
def reference(x, wb, bb, gamma, beta, wfc, bfc):
    """Pure-JAX reference (backbone matmul in bf16 to mirror the kernel path)."""
    b = x.shape[0]
    xf = x.reshape(b, N_PATCHES, IN_FEATS).astype(jnp.bfloat16)
    feats = jnp.einsum('bnf,fd->bnd', xf, wb.astype(jnp.bfloat16),
                       preferred_element_type=jnp.float32) + bb
    feats = jnp.maximum(feats, 0.0)
    pooled = jnp.max(feats, axis=1)                                   # (B, D)
    mean = jnp.mean(pooled, axis=-1, keepdims=True)
    var = jnp.mean((pooled - mean) ** 2, axis=-1, keepdims=True)
    normed = (pooled - mean) / jnp.sqrt(var + LN_EPS) * gamma + beta
    return normed @ wfc + bfc                                         # (B, OUT)


# ----------------------------- main ------------------------------------------
if __name__ == "__main__":
    key = jax.random.PRNGKey(0)
    kx, kwb, kbb, kg, kbt, kwfc, kbfc = jax.random.split(key, 7)

    # batched input patches, (B, N_patches, C, H, W)
    x = jax.random.normal(kx, (BATCH, N_PATCHES, C, H, W), dtype=jnp.float32)

    # synthetic backbone params (flatten -> Linear -> ReLU)
    wb = jax.random.normal(kwb, (IN_FEATS, EMBED_DIM), dtype=jnp.float32) * 0.02
    bb = jax.random.normal(kbb, (1, EMBED_DIM), dtype=jnp.float32) * 0.02

    # LayerNorm params (random, to exercise the affine-fold path)
    gamma = 1.0 + 0.1 * jax.random.normal(kg, (1, EMBED_DIM), dtype=jnp.float32)
    beta = 0.1 * jax.random.normal(kbt, (1, EMBED_DIM), dtype=jnp.float32)

    # fc params (stored as (in, out) == W.T of the PyTorch (out, in) weight)
    wfc = jax.random.normal(kwfc, (EMBED_DIM, OUT_FEATS), dtype=jnp.float32) * 0.1
    bfc = jax.random.normal(kbfc, (1, OUT_FEATS), dtype=jnp.float32) * 0.1

    # one-time prep (outside the per-call hot path)
    wb_bf16, wfc_pad, bias_pack = prepare_params(wb, bb, gamma, beta, wfc, bfc)
    run = make_patch_aggregator(BATCH)

    out = jax.block_until_ready(run(x, wb_bf16, wfc_pad, bias_pack))

    ref = reference(x, wb, bb, gamma, beta, wfc, bfc)
    assert out.shape == (BATCH, OUT_FEATS), out.shape
    assert jnp.allclose(out, ref, atol=2e-3, rtol=2e-3), (out, ref)

    print("KERNEL_OK")
</pallas_src>

<mosaic_0001>
module attributes {stable_mosaic.version = 11 : i64} {
  func.func @patch_aggregator_kernel(%arg0: i32, %arg1: memref<8x16x1024xbf16, #tpu.memory_space<vmem>>, %arg2: memref<1024x32xbf16, #tpu.memory_space<vmem>>, %arg3: memref<32x128xf32, #tpu.memory_space<vmem>>, %arg4: memref<2x128xf32, #tpu.memory_space<vmem>>, %arg5: memref<16x128xf32, #tpu.memory_space<vmem>>) attributes {dimension_semantics = [#tpu.dimension_semantics<arbitrary>], iteration_bounds = array<i64: 1>, scalar_prefetch = 0 : i64, scratch_operands = 0 : i64, tpu.core_type = #tpu.core_type<tc>, window_params = [{transform_indices = @transform_0, window_bounds = array<i64: 8, 16, 1024>}, {pipeline_mode = #tpu.pipeline_mode<synchronous>, transform_indices = @transform_1, window_bounds = array<i64: 1024, 32>}, {pipeline_mode = #tpu.pipeline_mode<synchronous>, transform_indices = @transform_2, window_bounds = array<i64: 32, 128>}, {pipeline_mode = #tpu.pipeline_mode<synchronous>, transform_indices = @transform_3, window_bounds = array<i64: 2, 128>}, {transform_indices = @transform_4, window_bounds = array<i64: 16, 128>}]} {
    %c0 = arith.constant 0 : index
    %c0_0 = arith.constant 0 : index
    %0 = vector.load %arg4[%c0, %c0_0] : memref<2x128xf32, #tpu.memory_space<vmem>>, vector<2x128xf32>
    %1 = vector.extract_strided_slice %0 {offsets = [0, 0], sizes = [1, 32], strides = [1, 1]} : vector<2x128xf32> to vector<1x32xf32>
    %2 = vector.extract_strided_slice %0 {offsets = [1, 0], sizes = [1, 128], strides = [1, 1]} : vector<2x128xf32> to vector<1x128xf32>
    %c0_1 = arith.constant 0 : index
    %c0_2 = arith.constant 0 : index
    %c0_3 = arith.constant 0 : index
    %3 = vector.load %arg1[%c0_1, %c0_2, %c0_3] : memref<8x16x1024xbf16, #tpu.memory_space<vmem>>, vector<8x16x1024xbf16>
    %4 = vector.shape_cast %3 : vector<8x16x1024xbf16> to vector<128x1024xbf16>
    %c0_4 = arith.constant 0 : index
    %c0_5 = arith.constant 0 : index
    %5 = vector.load %arg2[%c0_4, %c0_5] : memref<1024x32xbf16, #tpu.memory_space<vmem>>, vector<1024x32xbf16>
    %cst = arith.constant dense<0.000000e+00> : vector<128x32xf32>
    %6 = tpu.matmul %4, %5, %cst {dimension_numbers = #tpu.dot_dimension_numbers<[1], [0], [0], [1], [0, 0, 1, 1], [], []>} : vector<128x1024xbf16>, vector<1024x32xbf16>, vector<128x32xf32> -> vector<128x32xf32>
    %7 = vector.broadcast %1 : vector<1x32xf32> to vector<128x32xf32>
    %8 = arith.addf %6, %7 : vector<128x32xf32>
    %cst_6 = arith.constant 0.000000e+00 : f32
    %9 = vector.broadcast %cst_6 : f32 to vector<128x32xf32>
    %10 = arith.maximumf %8, %9 : vector<128x32xf32>
    %11 = vector.extract_strided_slice %10 {offsets = [0, 0], sizes = [16, 32], strides = [1, 1]} : vector<128x32xf32> to vector<16x32xf32>
    %12 = vector.extract_strided_slice %10 {offsets = [16, 0], sizes = [16, 32], strides = [1, 1]} : vector<128x32xf32> to vector<16x32xf32>
    %13 = arith.maximumf %11, %12 : vector<16x32xf32>
    %14 = vector.extract_strided_slice %10 {offsets = [32, 0], sizes = [16, 32], strides = [1, 1]} : vector<128x32xf32> to vector<16x32xf32>
    %15 = arith.maximumf %13, %14 : vector<16x32xf32>
    %16 = vector.extract_strided_slice %10 {offsets = [48, 0], sizes = [16, 32], strides = [1, 1]} : vector<128x32xf32> to vector<16x32xf32>
    %17 = arith.maximumf %15, %16 : vector<16x32xf32>
    %18 = vector.extract_strided_slice %10 {offsets = [64, 0], sizes = [16, 32], strides = [1, 1]} : vector<128x32xf32> to vector<16x32xf32>
    %19 = arith.maximumf %17, %18 : vector<16x32xf32>
    %20 = vector.extract_strided_slice %10 {offsets = [80, 0], sizes = [16, 32], strides = [1, 1]} : vector<128x32xf32> to vector<16x32xf32>
    %21 = arith.maximumf %19, %20 : vector<16x32xf32>
    %22 = vector.extract_strided_slice %10 {offsets = [96, 0], sizes = [16, 32], strides = [1, 1]} : vector<128x32xf32> to vector<16x32xf32>
    %23 = arith.maximumf %21, %22 : vector<16x32xf32>
    %24 = vector.extract_strided_slice %10 {offsets = [112, 0], sizes = [16, 32], strides = [1, 1]} : vector<128x32xf32> to vector<16x32xf32>
    %25 = arith.maximumf %23, %24 : vector<16x32xf32>
    %cst_7 = arith.constant dense<0.000000e+00> : vector<16xf32>
    %26 = vector.multi_reduction <add>, %25, %cst_7 [1] : vector<16x32xf32> to vector<16xf32>
    %27 = vector.shape_cast %26 : vector<16xf32> to vector<16x1xf32>
    %cst_8 = arith.constant 3.200000e+01 : f32
    %28 = vector.broadcast %cst_8 : f32 to vector<16x1xf32>
    %29 = arith.divf %27, %28 : vector<16x1xf32>
    %30 = vector.broadcast %29 : vector<16x1xf32> to vector<16x32xf32>
    %31 = arith.subf %25, %30 : vector<16x32xf32>
    %32 = arith.mulf %31, %31 : vector<16x32xf32>
    %cst_9 = arith.constant dense<0.000000e+00> : vector<16xf32>
    %33 = vector.multi_reduction <add>, %32, %cst_9 [1] : vector<16x32xf32> to vector<16xf32>
    %34 = vector.shape_cast %33 : vector<16xf32> to vector<16x1xf32>
    %cst_10 = arith.constant 3.200000e+01 : f32
    %35 = vector.broadcast %cst_10 : f32 to vector<16x1xf32>
    %36 = arith.divf %34, %35 : vector<16x1xf32>
    %37 = vector.broadcast %29 : vector<16x1xf32> to vector<16x32xf32>
    %38 = arith.subf %25, %37 : vector<16x32xf32>
    %cst_11 = arith.constant 9.99999974E-6 : f32
    %39 = vector.broadcast %cst_11 : f32 to vector<16x1xf32>
    %40 = arith.addf %36, %39 : vector<16x1xf32>
    %41 = math.rsqrt %40 : vector<16x1xf32>
    %42 = vector.broadcast %41 : vector<16x1xf32> to vector<16x32xf32>
    %43 = arith.mulf %38, %42 : vector<16x32xf32>
    %c0_12 = arith.constant 0 : index
    %c0_13 = arith.constant 0 : index
    %44 = vector.load %arg3[%c0_12, %c0_13] : memref<32x128xf32, #tpu.memory_space<vmem>>, vector<32x128xf32>
    %cst_14 = arith.constant dense<0.000000e+00> : vector<16x128xf32>
    %45 = tpu.matmul %43, %44, %cst_14 {dimension_numbers = #tpu.dot_dimension_numbers<[1], [0], [0], [1], [0, 0, 1, 1], [], []>} : vector<16x32xf32>, vector<32x128xf32>, vector<16x128xf32> -> vector<16x128xf32>
    %46 = vector.broadcast %2 : vector<1x128xf32> to vector<16x128xf32>
    %47 = arith.addf %45, %46 : vector<16x128xf32>
    %c0_15 = arith.constant 0 : index
    %c0_16 = arith.constant 0 : index
    %48 = vector.load %arg5[%c0_15, %c0_16] : memref<16x128xf32, #tpu.memory_space<vmem>>, vector<16x128xf32>
    tpu.vector_store %arg5[%c0_15, %c0_16], %47 {strides = array<i32>} : memref<16x128xf32, #tpu.memory_space<vmem>>, vector<16x128xf32>,
    return
  }
  func.func @transform_0(%arg0: i32) -> (i32, i32, i32) {
    %c0_i32 = arith.constant 0 : i32
    %c0_i32_0 = arith.constant 0 : i32
    %c0_i32_1 = arith.constant 0 : i32
    return %c0_i32, %arg0, %c0_i32_0 : i32, i32, i32
  }
  func.func @transform_1(%arg0: i32) -> (i32, i32) {
    %c0_i32 = arith.constant 0 : i32
    %c0_i32_0 = arith.constant 0 : i32
    %c0_i32_1 = arith.constant 0 : i32
    return %c0_i32, %c0_i32_0 : i32, i32
  }
  func.func @transform_2(%arg0: i32) -> (i32, i32) {
    %c0_i32 = arith.constant 0 : i32
    %c0_i32_0 = arith.constant 0 : i32
    %c0_i32_1 = arith.constant 0 : i32
    return %c0_i32, %c0_i32_0 : i32, i32
  }
  func.func @transform_3(%arg0: i32) -> (i32, i32) {
    %c0_i32 = arith.constant 0 : i32
    %c0_i32_0 = arith.constant 0 : i32
    %c0_i32_1 = arith.constant 0 : i32
    return %c0_i32, %c0_i32_0 : i32, i32
  }
  func.func @transform_4(%arg0: i32) -> (i32, i32) {
    %c0_i32 = arith.constant 0 : i32
    %c0_i32_0 = arith.constant 0 : i32
    return %arg0, %c0_i32 : i32, i32
  }
}

</mosaic_0001>

<llo_original>
// kernel: run.1
$region0: #{run.1}
  #allocation0 [shape = 'u32[]', space=smem, size = 0x4, offset = 0x4, fixed_abs, tag = 'smem constant byte address 0x4 - core index']
  #allocation1 [shape = 'u32[144,128]{1,0:T(1,128)}', space=vmem, size = 0x12000, scoped, tag = 'internal scratch']
  %s0 = inlined_call_operand.vmem [shape: bf16[8,16,1024], index: 0, kind: input, shape index: {}]
  %s1 = inlined_call_operand.vmem [shape: bf16[1024,32], index: 1, kind: input, shape index: {}]
  %s2 = inlined_call_operand.vmem [shape: f32[32,128], index: 2, kind: input, shape index: {}]
  %s3 = inlined_call_operand.vmem [shape: f32[2,128], index: 3, kind: input, shape index: {}]
  %s4 = inlined_call_operand.vmem [shape: f32[16,128], index: 4, kind: output, shape index: {}]
  %s5 = sld [smem:[#allocation0]]
  $region26: #{run.1} parent=0
    _
  %s7 = ssub.s32 1, %s5
  %s8 = scalar_select 0, %s7, %s5
  // Predicated region
  $region2: #{run.1} parent=0 // pred_check
    _
  $region3: #{run.1} parent=0 // pred_check_branch
    %10 = sbr.rel (0) target = $region5
  $region4: #{run.1} parent=0 // pred_region
    _
  $region5: #{run.1} parent=0 // pred_fallthru
    _
  // Predicated region
  $region6: #{run.1} parent=0 // pred_check
    _
  $region7: #{run.1} parent=0 // pred_check_branch
    %12 = sbr.rel (0) target = $region9
  $region8: #{run.1} parent=0 // pred_region
    _
  $region9: #{run.1} parent=0 // pred_fallthru
    _
  // Predicated region
  $region10: #{run.1} parent=0 // pred_check
    _
  $region11: #{run.1} parent=0 // pred_check_branch
    %14 = sbr.rel (0) target = $region13
  $region12: #{run.1} parent=0 // pred_region
    _
  $region13: #{run.1} parent=0 // pred_fallthru
    _
  // Predicated region
  $region14: #{run.1} parent=0 // pred_check
    _
  $region15: #{run.1} parent=0 // pred_check_branch
    %16 = sbr.rel (0) target = $region17
  $region16: #{run.1} parent=0 // pred_region
    _
  $region17: #{run.1} parent=0 // pred_fallthru
    _
  %v18 = vld [vmem:[%s3] sm:$0x3]
  %v19 = vld [vmem:[%s0] sm:$0xff]
  %v20 = vld [vmem:[%s0 + $0x8] sm:$0xff]
  %v21 = vld [vmem:[%s0 + $0x10] sm:$0xff]
  %v22 = vld [vmem:[%s0 + $0x18] sm:$0xff]
  %v23 = vld [vmem:[%s0 + $0x20] sm:$0xff]
  %v24 = vld [vmem:[%s0 + $0x28] sm:$0xff]
  %v25 = vld [vmem:[%s0 + $0x30] sm:$0xff]
  %v26 = vld [vmem:[%s0 + $0x38] sm:$0xff]
  %v27 = vld [vmem:[%s0 + $0x40] sm:$0xff]
  %v28 = vld [vmem:[%s0 + $0x48] sm:$0xff]
  %v29 = vld [vmem:[%s0 + $0x50] sm:$0xff]
  %v30 = vld [vmem:[%s0 + $0x58] sm:$0xff]
  %v31 = vld [vmem:[%s0 + $0x60] sm:$0xff]
  %v32 = vld [vmem:[%s0 + $0x68] sm:$0xff]
  %v33 = vld [vmem:[%s0 + $0x70] sm:$0xff]
  %v34 = vld [vmem:[%s0 + $0x78] sm:$0xff]
  %v35 = vld [vmem:[%s0 + $0x80] sm:$0xff]
  %v36 = vld [vmem:[%s0 + $0x88] sm:$0xff]
  %v37 = vld [vmem:[%s0 + $0x90] sm:$0xff]
  %v38 = vld [vmem:[%s0 + $0x98] sm:$0xff]
  %v39 = vld [vmem:[%s0 + $0xa0] sm:$0xff]
  %v40 = vld [vmem:[%s0 + $0xa8] sm:$0xff]
  %v41 = vld [vmem:[%s0 + $0xb0] sm:$0xff]
  %v42 = vld [vmem:[%s0 + $0xb8] sm:$0xff]
  %v43 = vld [vmem:[%s0 + $0xc0] sm:$0xff]
  %v44 = vld [vmem:[%s0 + $0xc8] sm:$0xff]
  %v45 = vld [vmem:[%s0 + $0xd0] sm:$0xff]
  %v46 = vld [vmem:[%s0 + $0xd8] sm:$0xff]
  %v47 = vld [vmem:[%s0 + $0xe0] sm:$0xff]
  %v48 = vld [vmem:[%s0 + $0xe8] sm:$0xff]
  %v49 = vld [vmem:[%s0 + $0xf0] sm:$0xff]
  %v50 = vld [vmem:[%s0 + $0xf8] sm:$0xff]
  %v51 = vld [vmem:[%s0 + $0x100] sm:$0xff]
  %v52 = vld [vmem:[%s0 + $0x108] sm:$0xff]
  %v53 = vld [vmem:[%s0 + $0x110] sm:$0xff]
  %v54 = vld [vmem:[%s0 + $0x118] sm:$0xff]
  %v55 = vld [vmem:[%s0 + $0x120] sm:$0xff]
  %v56 = vld [vmem:[%s0 + $0x128] sm:$0xff]
  %v57 = vld [vmem:[%s0 + $0x130] sm:$0xff]
  %v58 = vld [vmem:[%s0 + $0x138] sm:$0xff]
  %v59 = vld [vmem:[%s0 + $0x140] sm:$0xff]
  %v60 = vld [vmem:[%s0 + $0x148] sm:$0xff]
  %v61 = vld [vmem:[%s0 + $0x150] sm:$0xff]
  %v62 = vld [vmem:[%s0 + $0x158] sm:$0xff]
  %v63 = vld [vmem:[%s0 + $0x160] sm:$0xff]
  %v64 = vld [vmem:[%s0 + $0x168] sm:$0xff]
  %v65 = vld [vmem:[%s0 + $0x170] sm:$0xff]
  %v66 = vld [vmem:[%s0 + $0x178] sm:$0xff]
  %v67 = vld [vmem:[%s0 + $0x180] sm:$0xff]
  %v68 = vld [vmem:[%s0 + $0x188] sm:$0xff]
  %v69 = vld [vmem:[%s0 + $0x190] sm:$0xff]
  %v70 = vld [vmem:[%s0 + $0x198] sm:$0xff]
  %v71 = vld [vmem:[%s0 + $0x1a0] sm:$0xff]
  %v72 = vld [vmem:[%s0 + $0x1a8] sm:$0xff]
  %v73 = vld [vmem:[%s0 + $0x1b0] sm:$0xff]
  %v74 = vld [vmem:[%s0 + $0x1b8] sm:$0xff]
  %v75 = vld [vmem:[%s0 + $0x1c0] sm:$0xff]
  %v76 = vld [vmem:[%s0 + $0x1c8] sm:$0xff]
  %v77 = vld [vmem:[%s0 + $0x1d0] sm:$0xff]
  %v78 = vld [vmem:[%s0 + $0x1d8] sm:$0xff]
  %v79 = vld [vmem:[%s0 + $0x1e0] sm:$0xff]
  %v80 = vld [vmem:[%s0 + $0x1e8] sm:$0xff]
  %v81 = vld [vmem:[%s0 + $0x1f0] sm:$0xff]
  %v82 = vld [vmem:[%s0 + $0x1f8] sm:$0xff]
  %v83 = vld [vmem:[%s1] sm:$0xf]
  %v84 = vld [vmem:[%s1 + $0x4] sm:$0xf]
  %v85 = vld [vmem:[%s1 + $0x8] sm:$0xf]
  %v86 = vld [vmem:[%s1 + $0xc] sm:$0xf]
  %v87 = vld [vmem:[%s1 + $0x10] sm:$0xf]
  %v88 = vld [vmem:[%s1 + $0x14] sm:$0xf]
  %v89 = vld [vmem:[%s1 + $0x18] sm:$0xf]
  %v90 = vld [vmem:[%s1 + $0x1c] sm:$0xf]
  %v91 = vld [vmem:[%s1 + $0x20] sm:$0xf]
  %v92 = vld [vmem:[%s1 + $0x24] sm:$0xf]
  %v93 = vld [vmem:[%s1 + $0x28] sm:$0xf]
  %v94 = vld [vmem:[%s1 + $0x2c] sm:$0xf]
  %v95 = vld [vmem:[%s1 + $0x30] sm:$0xf]
  %v96 = vld [vmem:[%s1 + $0x34] sm:$0xf]
  %v97 = vld [vmem:[%s1 + $0x38] sm:$0xf]
  %v98 = vld [vmem:[%s1 + $0x3c] sm:$0xf]
  %v99 = vld [vmem:[%s1 + $0x40] sm:$0xf]
  %v100 = vld [vmem:[%s1 + $0x44] sm:$0xf]
  %v101 = vld [vmem:[%s1 + $0x48] sm:$0xf]
  %v102 = vld [vmem:[%s1 + $0x4c] sm:$0xf]
  %v103 = vld [vmem:[%s1 + $0x50] sm:$0xf]
  %v104 = vld [vmem:[%s1 + $0x54] sm:$0xf]
  %v105 = vld [vmem:[%s1 + $0x58] sm:$0xf]
  %v106 = vld [vmem:[%s1 + $0x5c] sm:$0xf]
  %v107 = vld [vmem:[%s1 + $0x60] sm:$0xf]
  %v108 = vld [vmem:[%s1 + $0x64] sm:$0xf]
  %v109 = vld [vmem:[%s1 + $0x68] sm:$0xf]
  %v110 = vld [vmem:[%s1 + $0x6c] sm:$0xf]
  %v111 = vld [vmem:[%s1 + $0x70] sm:$0xf]
  %v112 = vld [vmem:[%s1 + $0x74] sm:$0xf]
  %v113 = vld [vmem:[%s1 + $0x78] sm:$0xf]
  %v114 = vld [vmem:[%s1 + $0x7c] sm:$0xf]
  %v115 = vld [vmem:[%s1 + $0x80] sm:$0xf]
  %v116 = vld [vmem:[%s1 + $0x84] sm:$0xf]
  %v117 = vld [vmem:[%s1 + $0x88] sm:$0xf]
  %v118 = vld [vmem:[%s1 + $0x8c] sm:$0xf]
  %v119 = vld [vmem:[%s1 + $0x90] sm:$0xf]
  %v120 = vld [vmem:[%s1 + $0x94] sm:$0xf]
  %v121 = vld [vmem:[%s1 + $0x98] sm:$0xf]
  %v122 = vld [vmem:[%s1 + $0x9c] sm:$0xf]
  %v123 = vld [vmem:[%s1 + $0xa0] sm:$0xf]
  %v124 = vld [vmem:[%s1 + $0xa4] sm:$0xf]
  %v125 = vld [vmem:[%s1 + $0xa8] sm:$0xf]
  %v126 = vld [vmem:[%s1 + $0xac] sm:$0xf]
  %v127 = vld [vmem:[%s1 + $0xb0] sm:$0xf]
  %v128 = vld [vmem:[%s1 + $0xb4] sm:$0xf]
  %v129 = vld [vmem:[%s1 + $0xb8] sm:$0xf]
  %v130 = vld [vmem:[%s1 + $0xbc] sm:$0xf]
  %v131 = vld [vmem:[%s1 + $0xc0] sm:$0xf]
  %v132 = vld [vmem:[%s1 + $0xc4] sm:$0xf]
  %v133 = vld [vmem:[%s1 + $0xc8] sm:$0xf]
  %v134 = vld [vmem:[%s1 + $0xcc] sm:$0xf]
  %v135 = vld [vmem:[%s1 + $0xd0] sm:$0xf]
  %v136 = vld [vmem:[%s1 + $0xd4] sm:$0xf]
  %v137 = vld [vmem:[%s1 + $0xd8] sm:$0xf]
  %v138 = vld [vmem:[%s1 + $0xdc] sm:$0xf]
  %v139 = vld [vmem:[%s1 + $0xe0] sm:$0xf]
  %v140 = vld [vmem:[%s1 + $0xe4] sm:$0xf]
  %v141 = vld [vmem:[%s1 + $0xe8] sm:$0xf]
  %v142 = vld [vmem:[%s1 + $0xec] sm:$0xf]
  %v143 = vld [vmem:[%s1 + $0xf0] sm:$0xf]
  %v144 = vld [vmem:[%s1 + $0xf4] sm:$0xf]
  %v145 = vld [vmem:[%s1 + $0xf8] sm:$0xf]
  %v146 = vld [vmem:[%s1 + $0xfc] sm:$0xf]
  %v147 = vld [vmem:[%s1 + $0x100] sm:$0xf]
  %v148 = vld [vmem:[%s1 + $0x104] sm:$0xf]
  %v149 = vld [vmem:[%s1 + $0x108] sm:$0xf]
  %v150 = vld [vmem:[%s1 + $0x10c] sm:$0xf]
  %v151 = vld [vmem:[%s1 + $0x110] sm:$0xf]
  %v152 = vld [vmem:[%s1 + $0x114] sm:$0xf]
  %v153 = vld [vmem:[%s1 + $0x118] sm:$0xf]
  %v154 = vld [vmem:[%s1 + $0x11c] sm:$0xf]
  %v155 = vld [vmem:[%s1 + $0x120] sm:$0xf]
  %v156 = vld [vmem:[%s1 + $0x124] sm:$0xf]
  %v157 = vld [vmem:[%s1 + $0x128] sm:$0xf]
  %v158 = vld [vmem:[%s1 + $0x12c] sm:$0xf]
  %v159 = vld [vmem:[%s1 + $0x130] sm:$0xf]
  %v160 = vld [vmem:[%s1 + $0x134] sm:$0xf]
  %v161 = vld [vmem:[%s1 + $0x138] sm:$0xf]
  %v162 = vld [vmem:[%s1 + $0x13c] sm:$0xf]
  %v163 = vld [vmem:[%s1 + $0x140] sm:$0xf]
  %v164 = vld [vmem:[%s1 + $0x144] sm:$0xf]
  %v165 = vld [vmem:[%s1 + $0x148] sm:$0xf]
  %v166 = vld [vmem:[%s1 + $0x14c] sm:$0xf]
  %v167 = vld [vmem:[%s1 + $0x150] sm:$0xf]
  %v168 = vld [vmem:[%s1 + $0x154] sm:$0xf]
  %v169 = vld [vmem:[%s1 + $0x158] sm:$0xf]
  %v170 = vld [vmem:[%s1 + $0x15c] sm:$0xf]
  %v171 = vld [vmem:[%s1 + $0x160] sm:$0xf]
  %v172 = vld [vmem:[%s1 + $0x164] sm:$0xf]
  %v173 = vld [vmem:[%s1 + $0x168] sm:$0xf]
  %v174 = vld [vmem:[%s1 + $0x16c] sm:$0xf]
  %v175 = vld [vmem:[%s1 + $0x170] sm:$0xf]
  %v176 = vld [vmem:[%s1 + $0x174] sm:$0xf]
  %v177 = vld [vmem:[%s1 + $0x178] sm:$0xf]
  %v178 = vld [vmem:[%s1 + $0x17c] sm:$0xf]
  %v179 = vld [vmem:[%s1 + $0x180] sm:$0xf]
  %v180 = vld [vmem:[%s1 + $0x184] sm:$0xf]
  %v181 = vld [vmem:[%s1 + $0x188] sm:$0xf]
  %v182 = vld [vmem:[%s1 + $0x18c] sm:$0xf]
  %v183 = vld [vmem:[%s1 + $0x190] sm:$0xf]
  %v184 = vld [vmem:[%s1 + $0x194] sm:$0xf]
  %v185 = vld [vmem:[%s1 + $0x198] sm:$0xf]
  %v186 = vld [vmem:[%s1 + $0x19c] sm:$0xf]
  %v187 = vld [vmem:[%s1 + $0x1a0] sm:$0xf]
  %v188 = vld [vmem:[%s1 + $0x1a4] sm:$0xf]
  %v189 = vld [vmem:[%s1 + $0x1a8] sm:$0xf]
  %v190 = vld [vmem:[%s1 + $0x1ac] sm:$0xf]
  %v191 = vld [vmem:[%s1 + $0x1b0] sm:$0xf]
  %v192 = vld [vmem:[%s1 + $0x1b4] sm:$0xf]
  %v193 = vld [vmem:[%s1 + $0x1b8] sm:$0xf]
  %v194 = vld [vmem:[%s1 + $0x1bc] sm:$0xf]
  %v195 = vld [vmem:[%s1 + $0x1c0] sm:$0xf]
  %v196 = vld [vmem:[%s1 + $0x1c4] sm:$0xf]
  %v197 = vld [vmem:[%s1 + $0x1c8] sm:$0xf]
  %v198 = vld [vmem:[%s1 + $0x1cc] sm:$0xf]
  %v199 = vld [vmem:[%s1 + $0x1d0] sm:$0xf]
  %v200 = vld [vmem:[%s1 + $0x1d4] sm:$0xf]
  %v201 = vld [vmem:[%s1 + $0x1d8] sm:$0xf]
  %v202 = vld [vmem:[%s1 + $0x1dc] sm:$0xf]
  %v203 = vld [vmem:[%s1 + $0x1e0] sm:$0xf]
  %v204 = vld [vmem:[%s1 + $0x1e4] sm:$0xf]
  %v205 = vld [vmem:[%s1 + $0x1e8] sm:$0xf]
  %v206 = vld [vmem:[%s1 + $0x1ec] sm:$0xf]
  %v207 = vld [vmem:[%s1 + $0x1f0] sm:$0xf]
  %v208 = vld [vmem:[%s1 + $0x1f4] sm:$0xf]
  %v209 = vld [vmem:[%s1 + $0x1f8] sm:$0xf]
  %v210 = vld [vmem:[%s1 + $0x1fc] sm:$0xf]
  %v211 = vlaneseq
  %v212 = vshrl.u32 %v211, 7
  %v213 = vsub.s32 0, %v212
  %v214 = vrot.slane %v18, %v213
  %v279 = vunpack.c.l.b16 %v19
  %v280 = vunpack.c.h.b16 %v19
  %v281 = vunpack.c.l.b16 %v20
  %v282 = vunpack.c.h.b16 %v20
  %v283 = vunpack.c.l.b16 %v21
  %v284 = vunpack.c.h.b16 %v21
  %v285 = vunpack.c.l.b16 %v22
  %v286 = vunpack.c.h.b16 %v22
  %v287 = vunpack.c.l.b16 %v23
  %v288 = vunpack.c.h.b16 %v23
  %v289 = vunpack.c.l.b16 %v24
  %v290 = vunpack.c.h.b16 %v24
  %v291 = vunpack.c.l.b16 %v25
  %v292 = vunpack.c.h.b16 %v25
  %v293 = vunpack.c.l.b16 %v26
  %v294 = vunpack.c.h.b16 %v26
  %v295 = vunpack.c.l.b16 %v27
  %v296 = vunpack.c.h.b16 %v27
  %v297 = vunpack.c.l.b16 %v28
  %v298 = vunpack.c.h.b16 %v28
  %v299 = vunpack.c.l.b16 %v29
  %v300 = vunpack.c.h.b16 %v29
  %v301 = vunpack.c.l.b16 %v30
  %v302 = vunpack.c.h.b16 %v30
  %v303 = vunpack.c.l.b16 %v31
  %v304 = vunpack.c.h.b16 %v31
  %v305 = vunpack.c.l.b16 %v32
  %v306 = vunpack.c.h.b16 %v32
  %v307 = vunpack.c.l.b16 %v33
  %v308 = vunpack.c.h.b16 %v33
  %v309 = vunpack.c.l.b16 %v34
  %v310 = vunpack.c.h.b16 %v34
  %v311 = vunpack.c.l.b16 %v35
  %v312 = vunpack.c.h.b16 %v35
  %v313 = vunpack.c.l.b16 %v36
  %v314 = vunpack.c.h.b16 %v36
  %v315 = vunpack.c.l.b16 %v37
  %v316 = vunpack.c.h.b16 %v37
  %v317 = vunpack.c.l.b16 %v38
  %v318 = vunpack.c.h.b16 %v38
  %v319 = vunpack.c.l.b16 %v39
  %v320 = vunpack.c.h.b16 %v39
  %v321 = vunpack.c.l.b16 %v40
  %v322 = vunpack.c.h.b16 %v40
  %v323 = vunpack.c.l.b16 %v41
  %v324 = vunpack.c.h.b16 %v41
  %v325 = vunpack.c.l.b16 %v42
  %v326 = vunpack.c.h.b16 %v42
  %v327 = vunpack.c.l.b16 %v43
  %v328 = vunpack.c.h.b16 %v43
  %v329 = vunpack.c.l.b16 %v44
  %v330 = vunpack.c.h.b16 %v44
  %v331 = vunpack.c.l.b16 %v45
  %v332 = vunpack.c.h.b16 %v45
  %v333 = vunpack.c.l.b16 %v46
  %v334 = vunpack.c.h.b16 %v46
  %v335 = vunpack.c.l.b16 %v47
  %v336 = vunpack.c.h.b16 %v47
  %v337 = vunpack.c.l.b16 %v48
  %v338 = vunpack.c.h.b16 %v48
  %v339 = vunpack.c.l.b16 %v49
  %v340 = vunpack.c.h.b16 %v49
  %v341 = vunpack.c.l.b16 %v50
  %v342 = vunpack.c.h.b16 %v50
  %v343 = vunpack.c.l.b16 %v51
  %v344 = vunpack.c.h.b16 %v51
  %v345 = vunpack.c.l.b16 %v52
  %v346 = vunpack.c.h.b16 %v52
  %v347 = vunpack.c.l.b16 %v53
  %v348 = vunpack.c.h.b16 %v53
  %v349 = vunpack.c.l.b16 %v54
  %v350 = vunpack.c.h.b16 %v54
  %v351 = vunpack.c.l.b16 %v55
  %v352 = vunpack.c.h.b16 %v55
  %v353 = vunpack.c.l.b16 %v56
  %v354 = vunpack.c.h.b16 %v56
  %v355 = vunpack.c.l.b16 %v57
  %v356 = vunpack.c.h.b16 %v57
  %v357 = vunpack.c.l.b16 %v58
  %v358 = vunpack.c.h.b16 %v58
  %v359 = vunpack.c.l.b16 %v59
  %v360 = vunpack.c.h.b16 %v59
  %v361 = vunpack.c.l.b16 %v60
  %v362 = vunpack.c.h.b16 %v60
  %v363 = vunpack.c.l.b16 %v61
  %v364 = vunpack.c.h.b16 %v61
  %v365 = vunpack.c.l.b16 %v62
  %v366 = vunpack.c.h.b16 %v62
  %v367 = vunpack.c.l.b16 %v63
  %v368 = vunpack.c.h.b16 %v63
  %v369 = vunpack.c.l.b16 %v64
  %v370 = vunpack.c.h.b16 %v64
  %v371 = vunpack.c.l.b16 %v65
  %v372 = vunpack.c.h.b16 %v65
  %v373 = vunpack.c.l.b16 %v66
  %v374 = vunpack.c.h.b16 %v66
  %v375 = vunpack.c.l.b16 %v67
  %v376 = vunpack.c.h.b16 %v67
  %v377 = vunpack.c.l.b16 %v68
  %v378 = vunpack.c.h.b16 %v68
  %v379 = vunpack.c.l.b16 %v69
  %v380 = vunpack.c.h.b16 %v69
  %v381 = vunpack.c.l.b16 %v70
  %v382 = vunpack.c.h.b16 %v70
  %v383 = vunpack.c.l.b16 %v71
  %v384 = vunpack.c.h.b16 %v71
  %v385 = vunpack.c.l.b16 %v72
  %v386 = vunpack.c.h.b16 %v72
  %v387 = vunpack.c.l.b16 %v73
  %v388 = vunpack.c.h.b16 %v73
  %v389 = vunpack.c.l.b16 %v74
  %v390 = vunpack.c.h.b16 %v74
  %v391 = vunpack.c.l.b16 %v75
  %v392 = vunpack.c.h.b16 %v75
  %v393 = vunpack.c.l.b16 %v76
  %v394 = vunpack.c.h.b16 %v76
  %v395 = vunpack.c.l.b16 %v77
  %v396 = vunpack.c.h.b16 %v77
  %v397 = vunpack.c.l.b16 %v78
  %v398 = vunpack.c.h.b16 %v78
  %v399 = vunpack.c.l.b16 %v79
  %v400 = vunpack.c.h.b16 %v79
  %v401 = vunpack.c.l.b16 %v80
  %v402 = vunpack.c.h.b16 %v80
  %v403 = vunpack.c.l.b16 %v81
  %v404 = vunpack.c.h.b16 %v81
  %v405 = vunpack.c.l.b16 %v82
  %v406 = vunpack.c.h.b16 %v82
  %v407 = vpack.c.b16 %v287, %v279
  %v408 = vpack.c.b16 %v288, %v280
  %v409 = vpack.c.b16 %v289, %v281
  %v410 = vpack.c.b16 %v290, %v282
  %v411 = vpack.c.b16 %v291, %v283
  %v412 = vpack.c.b16 %v292, %v284
  %v413 = vpack.c.b16 %v293, %v285
  %v414 = vpack.c.b16 %v294, %v286
  %v415 = vpack.c.b16 %v303, %v295
  %v416 = vpack.c.b16 %v304, %v296
  %v417 = vpack.c.b16 %v305, %v297
  %v418 = vpack.c.b16 %v306, %v298
  %v419 = vpack.c.b16 %v307, %v299
  %v420 = vpack.c.b16 %v308, %v300
  %v421 = vpack.c.b16 %v309, %v301
  %v422 = vpack.c.b16 %v310, %v302
  %v423 = vpack.c.b16 %v319, %v311
  %v424 = vpack.c.b16 %v320, %v312
  %v425 = vpack.c.b16 %v321, %v313
  %v426 = vpack.c.b16 %v322, %v314
  %v427 = vpack.c.b16 %v323, %v315
  %v428 = vpack.c.b16 %v324, %v316
  %v429 = vpack.c.b16 %v325, %v317
  %v430 = vpack.c.b16 %v326, %v318
  %v431 = vpack.c.b16 %v335, %v327
  %v432 = vpack.c.b16 %v336, %v328
  %v433 = vpack.c.b16 %v337, %v329
  %v434 = vpack.c.b16 %v338, %v330
  %v435 = vpack.c.b16 %v339, %v331
  %v436 = vpack.c.b16 %v340, %v332
  %v437 = vpack.c.b16 %v341, %v333
  %v438 = vpack.c.b16 %v342, %v334
  %v439 = vpack.c.b16 %v351, %v343
  %v440 = vpack.c.b16 %v352, %v344
  %v441 = vpack.c.b16 %v353, %v345
  %v442 = vpack.c.b16 %v354, %v346
  %v443 = vpack.c.b16 %v355, %v347
  %v444 = vpack.c.b16 %v356, %v348
  %v445 = vpack.c.b16 %v357, %v349
  %v446 = vpack.c.b16 %v358, %v350
  %v447 = vpack.c.b16 %v367, %v359
  %v448 = vpack.c.b16 %v368, %v360
  %v449 = vpack.c.b16 %v369, %v361
  %v450 = vpack.c.b16 %v370, %v362
  %v451 = vpack.c.b16 %v371, %v363
  %v452 = vpack.c.b16 %v372, %v364
  %v453 = vpack.c.b16 %v373, %v365
  %v454 = vpack.c.b16 %v374, %v366
  %v455 = vpack.c.b16 %v383, %v375
  %v456 = vpack.c.b16 %v384, %v376
  %v457 = vpack.c.b16 %v385, %v377
  %v458 = vpack.c.b16 %v386, %v378
  %v459 = vpack.c.b16 %v387, %v379
  %v460 = vpack.c.b16 %v388, %v380
  %v461 = vpack.c.b16 %v389, %v381
  %v462 = vpack.c.b16 %v390, %v382
  %v463 = vpack.c.b16 %v399, %v391
  %v464 = vpack.c.b16 %v400, %v392
  %v465 = vpack.c.b16 %v401, %v393
  %v466 = vpack.c.b16 %v402, %v394
  %v467 = vpack.c.b16 %v403, %v395
  %v468 = vpack.c.b16 %v404, %v396
  %v469 = vpack.c.b16 %v405, %v397
  %v470 = vpack.c.b16 %v406, %v398
  %v663 = vunpack.c.l.b16 %v83
  %v664 = vunpack.c.l.b16 %v84
  %v665 = vunpack.c.l.b16 %v85
  %v666 = vunpack.c.l.b16 %v86
  %v667 = vunpack.c.l.b16 %v87
  %v668 = vunpack.c.l.b16 %v88
  %v669 = vunpack.c.l.b16 %v89
  %v670 = vunpack.c.l.b16 %v90
  %v671 = vunpack.c.l.b16 %v91
  %v672 = vunpack.c.l.b16 %v92
  %v673 = vunpack.c.l.b16 %v93
  %v674 = vunpack.c.l.b16 %v94
  %v675 = vunpack.c.l.b16 %v95
  %v676 = vunpack.c.l.b16 %v96
  %v677 = vunpack.c.l.b16 %v97
  %v678 = vunpack.c.l.b16 %v98
  %v679 = vunpack.c.l.b16 %v99
  %v680 = vunpack.c.l.b16 %v100
  %v681 = vunpack.c.l.b16 %v101
  %v682 = vunpack.c.l.b16 %v102
  %v683 = vunpack.c.l.b16 %v103
  %v684 = vunpack.c.l.b16 %v104
  %v685 = vunpack.c.l.b16 %v105
  %v686 = vunpack.c.l.b16 %v106
  %v687 = vunpack.c.l.b16 %v107
  %v688 = vunpack.c.l.b16 %v108
  %v689 = vunpack.c.l.b16 %v109
  %v690 = vunpack.c.l.b16 %v110
  %v691 = vunpack.c.l.b16 %v111
  %v692 = vunpack.c.l.b16 %v112
  %v693 = vunpack.c.l.b16 %v113
  %v694 = vunpack.c.l.b16 %v114
  %v695 = vunpack.c.l.b16 %v115
  %v696 = vunpack.c.l.b16 %v116
  %v697 = vunpack.c.l.b16 %v117
  %v698 = vunpack.c.l.b16 %v118
  %v699 = vunpack.c.l.b16 %v119
  %v700 = vunpack.c.l.b16 %v120
  %v701 = vunpack.c.l.b16 %v121
  %v702 = vunpack.c.l.b16 %v122
  %v703 = vunpack.c.l.b16 %v123
  %v704 = vunpack.c.l.b16 %v124
  %v705 = vunpack.c.l.b16 %v125
  %v706 = vunpack.c.l.b16 %v126
  %v707 = vunpack.c.l.b16 %v127
  %v708 = vunpack.c.l.b16 %v128
  %v709 = vunpack.c.l.b16 %v129
  %v710 = vunpack.c.l.b16 %v130
  %v711 = vunpack.c.l.b16 %v131
  %v712 = vunpack.c.l.b16 %v132
  %v713 = vunpack.c.l.b16 %v133
  %v714 = vunpack.c.l.b16 %v134
  %v715 = vunpack.c.l.b16 %v135
  %v716 = vunpack.c.l.b16 %v136
  %v717 = vunpack.c.l.b16 %v137
  %v718 = vunpack.c.l.b16 %v138
  %v719 = vunpack.c.l.b16 %v139
  %v720 = vunpack.c.l.b16 %v140
  %v721 = vunpack.c.l.b16 %v141
  %v722 = vunpack.c.l.b16 %v142
  %v723 = vunpack.c.l.b16 %v143
  %v724 = vunpack.c.l.b16 %v144
  %v725 = vunpack.c.l.b16 %v145
  %v726 = vunpack.c.l.b16 %v146
  %v727 = vunpack.c.l.b16 %v147
  %v728 = vunpack.c.l.b16 %v148
  %v729 = vunpack.c.l.b16 %v149
  %v730 = vunpack.c.l.b16 %v150
  %v731 = vunpack.c.l.b16 %v151
  %v732 = vunpack.c.l.b16 %v152
  %v733 = vunpack.c.l.b16 %v153
  %v734 = vunpack.c.l.b16 %v154
  %v735 = vunpack.c.l.b16 %v155
  %v736 = vunpack.c.l.b16 %v156
  %v737 = vunpack.c.l.b16 %v157
  %v738 = vunpack.c.l.b16 %v158
  %v739 = vunpack.c.l.b16 %v159
  %v740 = vunpack.c.l.b16 %v160
  %v741 = vunpack.c.l.b16 %v161
  %v742 = vunpack.c.l.b16 %v162
  %v743 = vunpack.c.l.b16 %v163
  %v744 = vunpack.c.l.b16 %v164
  %v745 = vunpack.c.l.b16 %v165
  %v746 = vunpack.c.l.b16 %v166
  %v747 = vunpack.c.l.b16 %v167
  %v748 = vunpack.c.l.b16 %v168
  %v749 = vunpack.c.l.b16 %v169
  %v750 = vunpack.c.l.b16 %v170
  %v751 = vunpack.c.l.b16 %v171
  %v752 = vunpack.c.l.b16 %v172
  %v753 = vunpack.c.l.b16 %v173
  %v754 = vunpack.c.l.b16 %v174
  %v755 = vunpack.c.l.b16 %v175
  %v756 = vunpack.c.l.b16 %v176
  %v757 = vunpack.c.l.b16 %v177
  %v758 = vunpack.c.l.b16 %v178
  %v759 = vunpack.c.l.b16 %v179
  %v760 = vunpack.c.l.b16 %v180
  %v761 = vunpack.c.l.b16 %v181
  %v762 = vunpack.c.l.b16 %v182
  %v763 = vunpack.c.l.b16 %v183
  %v764 = vunpack.c.l.b16 %v184
  %v765 = vunpack.c.l.b16 %v185
  %v766 = vunpack.c.l.b16 %v186
  %v767 = vunpack.c.l.b16 %v187
  %v768 = vunpack.c.l.b16 %v188
  %v769 = vunpack.c.l.b16 %v189
  %v770 = vunpack.c.l.b16 %v190
  %v771 = vunpack.c.l.b16 %v191
  %v772 = vunpack.c.l.b16 %v192
  %v773 = vunpack.c.l.b16 %v193
  %v774 = vunpack.c.l.b16 %v194
  %v775 = vunpack.c.l.b16 %v195
  %v776 = vunpack.c.l.b16 %v196
  %v777 = vunpack.c.l.b16 %v197
  %v778 = vunpack.c.l.b16 %v198
  %v779 = vunpack.c.l.b16 %v199
  %v780 = vunpack.c.l.b16 %v200
  %v781 = vunpack.c.l.b16 %v201
  %v782 = vunpack.c.l.b16 %v202
  %v783 = vunpack.c.l.b16 %v203
  %v784 = vunpack.c.l.b16 %v204
  %v785 = vunpack.c.l.b16 %v205
  %v786 = vunpack.c.l.b16 %v206
  %v787 = vunpack.c.l.b16 %v207
  %v788 = vunpack.c.l.b16 %v208
  %v789 = vunpack.c.l.b16 %v209
  %v790 = vunpack.c.l.b16 %v210
  %v791 = vpack.c.b16 %v664, %v663
  %v792 = vpack.c.b16 %v666, %v665
  %v793 = vpack.c.b16 %v668, %v667
  %v794 = vpack.c.b16 %v670, %v669
  %v795 = vpack.c.b16 %v672, %v671
  %v796 = vpack.c.b16 %v674, %v673
  %v797 = vpack.c.b16 %v676, %v675
  %v798 = vpack.c.b16 %v678, %v677
  %v799 = vpack.c.b16 %v680, %v679
  %v800 = vpack.c.b16 %v682, %v681
  %v801 = vpack.c.b16 %v684, %v683
  %v802 = vpack.c.b16 %v686, %v685
  %v803 = vpack.c.b16 %v688, %v687
  %v804 = vpack.c.b16 %v690, %v689
  %v805 = vpack.c.b16 %v692, %v691
  %v806 = vpack.c.b16 %v694, %v693
  %v807 = vpack.c.b16 %v696, %v695
  %v808 = vpack.c.b16 %v698, %v697
  %v809 = vpack.c.b16 %v700, %v699
  %v810 = vpack.c.b16 %v702, %v701
  %v811 = vpack.c.b16 %v704, %v703
  %v812 = vpack.c.b16 %v706, %v705
  %v813 = vpack.c.b16 %v708, %v707
  %v814 = vpack.c.b16 %v710, %v709
  %v815 = vpack.c.b16 %v712, %v711
  %v816 = vpack.c.b16 %v714, %v713
  %v817 = vpack.c.b16 %v716, %v715
  %v818 = vpack.c.b16 %v718, %v717
  %v819 = vpack.c.b16 %v720, %v719
  %v820 = vpack.c.b16 %v722, %v721
  %v821 = vpack.c.b16 %v724, %v723
  %v822 = vpack.c.b16 %v726, %v725
  %v823 = vpack.c.b16 %v728, %v727
  %v824 = vpack.c.b16 %v730, %v729
  %v825 = vpack.c.b16 %v732, %v731
  %v826 = vpack.c.b16 %v734, %v733
  %v827 = vpack.c.b16 %v736, %v735
  %v828 = vpack.c.b16 %v738, %v737
  %v829 = vpack.c.b16 %v740, %v739
  %v830 = vpack.c.b16 %v742, %v741
  %v831 = vpack.c.b16 %v744, %v743
  %v832 = vpack.c.b16 %v746, %v745
  %v833 = vpack.c.b16 %v748, %v747
  %v834 = vpack.c.b16 %v750, %v749
  %v835 = vpack.c.b16 %v752, %v751
  %v836 = vpack.c.b16 %v754, %v753
  %v837 = vpack.c.b16 %v756, %v755
  %v838 = vpack.c.b16 %v758, %v757
  %v839 = vpack.c.b16 %v760, %v759
  %v840 = vpack.c.b16 %v762, %v761
  %v841 = vpack.c.b16 %v764, %v763
  %v842 = vpack.c.b16 %v766, %v765
  %v843 = vpack.c.b16 %v768, %v767
  %v844 = vpack.c.b16 %v770, %v769
  %v845 = vpack.c.b16 %v772, %v771
  %v846 = vpack.c.b16 %v774, %v773
  %v847 = vpack.c.b16 %v776, %v775
  %v848 = vpack.c.b16 %v778, %v777
  %v849 = vpack.c.b16 %v780, %v779
  %v850 = vpack.c.b16 %v782, %v781
  %v851 = vpack.c.b16 %v784, %v783
  %v852 = vpack.c.b16 %v786, %v785
  %v853 = vpack.c.b16 %v788, %v787
  %v854 = vpack.c.b16 %v790, %v789
  %919 = vmatprep.subr.bf16.mxu0 0
  %920 = vmatpush1.bf16.msra.mxu0 %v791
  %921 = vmatprep.subr.bf16.mxu0 0
  %922 = vmatpush1.bf16.msra.mxu0 %v792
  %923 = vmatprep.subr.bf16.mxu0 0
  %924 = vmatpush1.bf16.msra.mxu0 %v793
  %925 = vmatprep.subr.bf16.mxu0 0
  %926 = vmatpush1.bf16.msra.mxu0 %v794
  %927 = vmatprep.subr.bf16.mxu0 0
  %928 = vmatpush1.bf16.msra.mxu0 %v795
  %929 = vmatprep.subr.bf16.mxu0 0
  %930 = vmatpush1.bf16.msra.mxu0 %v796
  %931 = vmatprep.subr.bf16.mxu0 0
  %932 = vmatpush1.bf16.msra.mxu0 %v797
  %933 = vmatprep.subr.bf16.mxu0 0
  %934 = vmatpush1.bf16.msra.mxu0 %v798
  %935 = vmatprep.subr.bf16.mxu0 0
  %936 = vmatpush1.bf16.msra.mxu0 %v799
  %937 = vmatprep.subr.bf16.mxu0 0
  %938 = vmatpush1.bf16.msra.mxu0 %v800
  %939 = vmatprep.subr.bf16.mxu0 0
  %940 = vmatpush1.bf16.msra.mxu0 %v801
  %941 = vmatprep.subr.bf16.mxu0 0
  %942 = vmatpush1.bf16.msra.mxu0 %v802
  %943 = vmatprep.subr.bf16.mxu0 0
  %944 = vmatpush1.bf16.msra.mxu0 %v803
  %945 = vmatprep.subr.bf16.mxu0 0
  %946 = vmatpush1.bf16.msra.mxu0 %v804
  %947 = vmatprep.subr.bf16.mxu0 0
  %948 = vmatpush1.bf16.msra.mxu0 %v805
  %949 = vmatprep.subr.bf16.mxu0 0
  %950 = vmatpush1.bf16.msra.mxu0 %v806
  %951 = vmatprep.mubr.bf16.mxu0 %v408
  %952 = vmatmul.mubr.bf16.gmra.mrb[0].mxu0 %v407
  %v953 = vpop.f32.mrb[0].mxu0
  %v954 = vadd.f32 %v214, %v953
  %v955 = vpop.f32.mrb[0].mxu0
  %v956 = vpop.f32.mrb[0].mxu0
  %v957 = vadd.f32 %v214, %v956
  %v958 = vpop.f32.mrb[0].mxu0
  %959 = vmatprep.mubr.bf16.mxu0 %v416
  %960 = vmatmul.mubr.bf16.gmra.mrb[0].mxu0 %v415
  %v961 = vpop.f32.mrb[0].mxu0
  %v962 = vadd.f32 %v214, %v961
  %v963 = vpop.f32.mrb[0].mxu0
  %v964 = vpop.f32.mrb[0].mxu0
  %v965 = vadd.f32 %v214, %v964
  %v966 = vpop.f32.mrb[0].mxu0
  %967 = vmatprep.mubr.bf16.mxu0 %v424
  %968 = vmatmul.mubr.bf16.gmra.mrb[0].mxu0 %v423
  %v969 = vpop.f32.mrb[0].mxu0
  %v970 = vadd.f32 %v214, %v969
  %v971 = vpop.f32.mrb[0].mxu0
  %v972 = vpop.f32.mrb[0].mxu0
  %v973 = vadd.f32 %v214, %v972
  %v974 = vpop.f32.mrb[0].mxu0
  %975 = vmatprep.mubr.bf16.mxu0 %v432
  %976 = vmatmul.mubr.bf16.gmra.mrb[0].mxu0 %v431
  %v977 = vpop.f32.mrb[0].mxu0
  %v978 = vadd.f32 %v214, %v977
  %v979 = vpop.f32.mrb[0].mxu0
  %v980 = vpop.f32.mrb[0].mxu0
  %v981 = vadd.f32 %v214, %v980
  %v982 = vpop.f32.mrb[0].mxu0
  %983 = vmatprep.mubr.bf16.mxu0 %v440
  %984 = vmatmul.mubr.bf16.gmra.mrb[0].mxu0 %v439
  %v985 = vpop.f32.mrb[0].mxu0
  %v986 = vadd.f32 %v214, %v985
  %v987 = vpop.f32.mrb[0].mxu0
  %v988 = vpop.f32.mrb[0].mxu0
  %v989 = vadd.f32 %v214, %v988
  %v990 = vpop.f32.mrb[0].mxu0
  %991 = vmatprep.mubr.bf16.mxu0 %v448
  %992 = vmatmul.mubr.bf16.gmra.mrb[0].mxu0 %v447
  %v993 = vpop.f32.mrb[0].mxu0
  %v994 = vadd.f32 %v214, %v993
  %v995 = vpop.f32.mrb[0].mxu0
  %v996 = vpop.f32.mrb[0].mxu0
  %v997 = vadd.f32 %v214, %v996
  %v998 = vpop.f32.mrb[0].mxu0
  %999 = vmatprep.mubr.bf16.mxu0 %v456
  %1000 = vmatmul.mubr.bf16.gmra.mrb[0].mxu0 %v455
  %v1001 = vpop.f32.mrb[0].mxu0
  %v1002 = vadd.f32 %v214, %v1001
  %v1003 = vpop.f32.mrb[0].mxu0
  %v1004 = vpop.f32.mrb[0].mxu0
  %v1005 = vadd.f32 %v214, %v1004
  %v1006 = vpop.f32.mrb[0].mxu0
  %1007 = vmatprep.mubr.bf16.mxu0 %v464
  %1008 = vmatmul.mubr.bf16.gmra.mrb[0].mxu0 %v463
  %v1009 = vpop.f32.mrb[0].mxu0
  %v1010 = vadd.f32 %v214, %v1009
  %v1011 = vpop.f32.mrb[0].mxu0
  %v1012 = vpop.f32.mrb[0].mxu0
  %v1013 = vadd.f32 %v214, %v1012
  %v1014 = vpop.f32.mrb[0].mxu0
  %1015 = vdwg.mxu0
  %1016 = vmatprep.subr.bf16.mxu0 0
  %1017 = vmatpush1.bf16.msra.mxu0 %v807
  %1018 = vmatprep.subr.bf16.mxu0 0
  %1019 = vmatpush1.bf16.msra.mxu0 %v808
  %1020 = vmatprep.subr.bf16.mxu0 0
  %1021 = vmatpush1.bf16.msra.mxu0 %v809
  %1022 = vmatprep.subr.bf16.mxu0 0
  %1023 = vmatpush1.bf16.msra.mxu0 %v810
  %1024 = vmatprep.subr.bf16.mxu0 0
  %1025 = vmatpush1.bf16.msra.mxu0 %v811
  %1026 = vmatprep.subr.bf16.mxu0 0
  %1027 = vmatpush1.bf16.msra.mxu0 %v812
  %1028 = vmatprep.subr.bf16.mxu0 0
  %1029 = vmatpush1.bf16.msra.mxu0 %v813
  %1030 = vmatprep.subr.bf16.mxu0 0
  %1031 = vmatpush1.bf16.msra.mxu0 %v814
  %1032 = vmatprep.subr.bf16.mxu0 0
  %1033 = vmatpush1.bf16.msra.mxu0 %v815
  %1034 = vmatprep.subr.bf16.mxu0 0
  %1035 = vmatpush1.bf16.msra.mxu0 %v816
  %1036 = vmatprep.subr.bf16.mxu0 0
  %1037 = vmatpush1.bf16.msra.mxu0 %v817
  %1038 = vmatprep.subr.bf16.mxu0 0
  %1039 = vmatpush1.bf16.msra.mxu0 %v818
  %1040 = vmatprep.subr.bf16.mxu0 0
  %1041 = vmatpush1.bf16.msra.mxu0 %v819
  %1042 = vmatprep.subr.bf16.mxu0 0
  %1043 = vmatpush1.bf16.msra.mxu0 %v820
  %1044 = vmatprep.subr.bf16.mxu0 0
  %1045 = vmatpush1.bf16.msra.mxu0 %v821
  %1046 = vmatprep.subr.bf16.mxu0 0
  %1047 = vmatpush1.bf16.msra.mxu0 %v822
  %1048 = vmatprep.mubr.bf16.mxu0 %v410
  %1049 = vmatmul.mubr.bf16.gmra.mrb[0].mxu0 %v409
  %v1050 = vpop.f32.mrb[0].mxu0
  %v1051 = vadd.f32 %v954, %v1050
  %v1052 = vpop.f32.mrb[0].mxu0
  %v1053 = vpop.f32.mrb[0].mxu0
  %v1054 = vadd.f32 %v957, %v1053
  %v1055 = vpop.f32.mrb[0].mxu0
  %1056 = vmatprep.mubr.bf16.mxu0 %v418
  %1057 = vmatmul.mubr.bf16.gmra.mrb[0].mxu0 %v417
  %v1058 = vpop.f32.mrb[0].mxu0
  %v1059 = vadd.f32 %v962, %v1058
  %v1060 = vpop.f32.mrb[0].mxu0
  %v1061 = vpop.f32.mrb[0].mxu0
  %v1062 = vadd.f32 %v965, %v1061
  %v1063 = vpop.f32.mrb[0].mxu0
  %1064 = vmatprep.mubr.bf16.mxu0 %v426
  %1065 = vmatmul.mubr.bf16.gmra.mrb[0].mxu0 %v425
  %v1066 = vpop.f32.mrb[0].mxu0
  %v1067 = vadd.f32 %v970, %v1066
  %v1068 = vpop.f32.mrb[0].mxu0
  %v1069 = vpop.f32.mrb[0].mxu0
  %v1070 = vadd.f32 %v973, %v1069
  %v1071 = vpop.f32.mrb[0].mxu0
  %1072 = vmatprep.mubr.bf16.mxu0 %v434
  %1073 = vmatmul.mubr.bf16.gmra.mrb[0].mxu0 %v433
  %v1074 = vpop.f32.mrb[0].mxu0
  %v1075 = vadd.f32 %v978, %v1074
  %v1076 = vpop.f32.mrb[0].mxu0
  %v1077 = vpop.f32.mrb[0].mxu0
  %v1078 = vadd.f32 %v981, %v1077
  %v1079 = vpop.f32.mrb[0].mxu0
  %1080 = vmatprep.mubr.bf16.mxu0 %v442
  %1081 = vmatmul.mubr.bf16.gmra.mrb[0].mxu0 %v441
  %v1082 = vpop.f32.mrb[0].mxu0
  %v1083 = vadd.f32 %v986, %v1082
  %v1084 = vpop.f32.mrb[0].mxu0
  %v1085 = vpop.f32.mrb[0].mxu0
  %v1086 = vadd.f32 %v989, %v1085
  %v1087 = vpop.f32.mrb[0].mxu0
  %1088 = vmatprep.mubr.bf16.mxu0 %v450
  %1089 = vmatmul.mubr.bf16.gmra.mrb[0].mxu0 %v449
  %v1090 = vpop.f32.mrb[0].mxu0
  %v1091 = vadd.f32 %v994, %v1090
  %v1092 = vpop.f32.mrb[0].mxu0
  %v1093 = vpop.f32.mrb[0].mxu0
  %v1094 = vadd.f32 %v997, %v1093
  %v1095 = vpop.f32.mrb[0].mxu0
  %1096 = vmatprep.mubr.bf16.mxu0 %v458
  %1097 = vmatmul.mubr.bf16.gmra.mrb[0].mxu0 %v457
  %v1098 = vpop.f32.mrb[0].mxu0
  %v1099 = vadd.f32 %v1002, %v1098
  %v1100 = vpop.f32.mrb[0].mxu0
  %v1101 = vpop.f32.mrb[0].mxu0
  %v1102 = vadd.f32 %v1005, %v1101
  %v1103 = vpop.f32.mrb[0].mxu0
  %1104 = vmatprep.mubr.bf16.mxu0 %v466
  %1105 = vmatmul.mubr.bf16.gmra.mrb[0].mxu0 %v465
  %v1106 = vpop.f32.mrb[0].mxu0
  %v1107 = vadd.f32 %v1010, %v1106
  %v1108 = vpop.f32.mrb[0].mxu0
  %v1109 = vpop.f32.mrb[0].mxu0
  %v1110 = vadd.f32 %v1013, %v1109
  %v1111 = vpop.f32.mrb[0].mxu0
  %1112 = vdwg.mxu0
  %1113 = vmatprep.subr.bf16.mxu0 0
  %1114 = vmatpush1.bf16.msra.mxu0 %v823
  %1115 = vmatprep.subr.bf16.mxu0 0
  %1116 = vmatpush1.bf16.msra.mxu0 %v824
  %1117 = vmatprep.subr.bf16.mxu0 0
  %1118 = vmatpush1.bf16.msra.mxu0 %v825
  %1119 = vmatprep.subr.bf16.mxu0 0
  %1120 = vmatpush1.bf16.msra.mxu0 %v826
  %1121 = vmatprep.subr.bf16.mxu0 0
  %1122 = vmatpush1.bf16.msra.mxu0 %v827
  %1123 = vmatprep.subr.bf16.mxu0 0
  %1124 = vmatpush1.bf16.msra.mxu0 %v828
  %1125 = vmatprep.subr.bf16.mxu0 0
  %1126 = vmatpush1.bf16.msra.mxu0 %v829
  %1127 = vmatprep.subr.bf16.mxu0 0
  %1128 = vmatpush1.bf16.msra.mxu0 %v830
  %1129 = vmatprep.subr.bf16.mxu0 0
  %1130 = vmatpush1.bf16.msra.mxu0 %v831
  %1131 = vmatprep.subr.bf16.mxu0 0
  %1132 = vmatpush1.bf16.msra.mxu0 %v832
  %1133 = vmatprep.subr.bf16.mxu0 0
  %1134 = vmatpush1.bf16.msra.mxu0 %v833
  %1135 = vmatprep.subr.bf16.mxu0 0
  %1136 = vmatpush1.bf16.msra.mxu0 %v834
  %1137 = vmatprep.subr.bf16.mxu0 0
  %1138 = vmatpush1.bf16.msra.mxu0 %v835
  %1139 = vmatprep.subr.bf16.mxu0 0
  %1140 = vmatpush1.bf16.msra.mxu0 %v836
  %1141 = vmatprep.subr.bf16.mxu0 0
  %1142 = vmatpush1.bf16.msra.mxu0 %v837
  %1143 = vmatprep.subr.bf16.mxu0 0
  %1144 = vmatpush1.bf16.msra.mxu0 %v838
  %1145 = vmatprep.mubr.bf16.mxu0 %v412
  %1146 = vmatmul.mubr.bf16.gmra.mrb[0].mxu0 %v411
  %v1147 = vpop.f32.mrb[0].mxu0
  %v1148 = vadd.f32 %v1051, %v1147
  %v1149 = vpop.f32.mrb[0].mxu0
  %v1150 = vpop.f32.mrb[0].mxu0
  %v1151 = vadd.f32 %v1054, %v1150
  %v1152 = vpop.f32.mrb[0].mxu0
  %1153 = vmatprep.mubr.bf16.mxu0 %v420
  %1154 = vmatmul.mubr.bf16.gmra.mrb[0].mxu0 %v419
  %v1155 = vpop.f32.mrb[0].mxu0
  %v1156 = vadd.f32 %v1059, %v1155
  %v1157 = vpop.f32.mrb[0].mxu0
  %v1158 = vpop.f32.mrb[0].mxu0
  %v1159 = vadd.f32 %v1062, %v1158
  %v1160 = vpop.f32.mrb[0].mxu0
  %1161 = vmatprep.mubr.bf16.mxu0 %v428
  %1162 = vmatmul.mubr.bf16.gmra.mrb[0].mxu0 %v427
  %v1163 = vpop.f32.mrb[0].mxu0
  %v1164 = vadd.f32 %v1067, %v1163
  %v1165 = vpop.f32.mrb[0].mxu0
  %v1166 = vpop.f32.mrb[0].mxu0
  %v1167 = vadd.f32 %v1070, %v1166
  %v1168 = vpop.f32.mrb[0].mxu0
  %1169 = vmatprep.mubr.bf16.mxu0 %v436
  %1170 = vmatmul.mubr.bf16.gmra.mrb[0].mxu0 %v435
  %v1171 = vpop.f32.mrb[0].mxu0
  %v1172 = vadd.f32 %v1075, %v1171
  %v1173 = vpop.f32.mrb[0].mxu0
  %v1174 = vpop.f32.mrb[0].mxu0
  %v1175 = vadd.f32 %v1078, %v1174
  %v1176 = vpop.f32.mrb[0].mxu0
  %1177 = vmatprep.mubr.bf16.mxu0 %v444
  %1178 = vmatmul.mubr.bf16.gmra.mrb[0].mxu0 %v443
  %v1179 = vpop.f32.mrb[0].mxu0
  %v1180 = vadd.f32 %v1083, %v1179
  %v1181 = vpop.f32.mrb[0].mxu0
  %v1182 = vpop.f32.mrb[0].mxu0
  %v1183 = vadd.f32 %v1086, %v1182
  %v1184 = vpop.f32.mrb[0].mxu0
  %1185 = vmatprep.mubr.bf16.mxu0 %v452
  %1186 = vmatmul.mubr.bf16.gmra.mrb[0].mxu0 %v451
  %v1187 = vpop.f32.mrb[0].mxu0
  %v1188 = vadd.f32 %v1091, %v1187
  %v1189 = vpop.f32.mrb[0].mxu0
  %v1190 = vpop.f32.mrb[0].mxu0
  %v1191 = vadd.f32 %v1094, %v1190
  %v1192 = vpop.f32.mrb[0].mxu0
  %1193 = vmatprep.mubr.bf16.mxu0 %v460
  %1194 = vmatmul.mubr.bf16.gmra.mrb[0].mxu0 %v459
  %v1195 = vpop.f32.mrb[0].mxu0
  %v1196 = vadd.f32 %v1099, %v1195
  %v1197 = vpop.f32.mrb[0].mxu0
  %v1198 = vpop.f32.mrb[0].mxu0
  %v1199 = vadd.f32 %v1102, %v1198
  %v1200 = vpop.f32.mrb[0].mxu0
  %1201 = vmatprep.mubr.bf16.mxu0 %v468
  %1202 = vmatmul.mubr.bf16.gmra.mrb[0].mxu0 %v467
  %v1203 = vpop.f32.mrb[0].mxu0
  %v1204 = vadd.f32 %v1107, %v1203
  %v1205 = vpop.f32.mrb[0].mxu0
  %v1206 = vpop.f32.mrb[0].mxu0
  %v1207 = vadd.f32 %v1110, %v1206
  %v1208 = vpop.f32.mrb[0].mxu0
  %1209 = vdwg.mxu0
  %1210 = vmatprep.subr.bf16.mxu0 0
  %1211 = vmatpush1.bf16.msra.mxu0 %v839
  %1212 = vmatprep.subr.bf16.mxu0 0
  %1213 = vmatpush1.bf16.msra.mxu0 %v840
  %1214 = vmatprep.subr.bf16.mxu0 0
  %1215 = vmatpush1.bf16.msra.mxu0 %v841
  %1216 = vmatprep.subr.bf16.mxu0 0
  %1217 = vmatpush1.bf16.msra.mxu0 %v842
  %1218 = vmatprep.subr.bf16.mxu0 0
  %1219 = vmatpush1.bf16.msra.mxu0 %v843
  %1220 = vmatprep.subr.bf16.mxu0 0
  %1221 = vmatpush1.bf16.msra.mxu0 %v844
  %1222 = vmatprep.subr.bf16.mxu0 0
  %1223 = vmatpush1.bf16.msra.mxu0 %v845
  %1224 = vmatprep.subr.bf16.mxu0 0
  %1225 = vmatpush1.bf16.msra.mxu0 %v846
  %1226 = vmatprep.subr.bf16.mxu0 0
  %1227 = vmatpush1.bf16.msra.mxu0 %v847
  %1228 = vmatprep.subr.bf16.mxu0 0
  %1229 = vmatpush1.bf16.msra.mxu0 %v848
  %1230 = vmatprep.subr.bf16.mxu0 0
  %1231 = vmatpush1.bf16.msra.mxu0 %v849
  %1232 = vmatprep.subr.bf16.mxu0 0
  %1233 = vmatpush1.bf16.msra.mxu0 %v850
  %1234 = vmatprep.subr.bf16.mxu0 0
  %1235 = vmatpush1.bf16.msra.mxu0 %v851
  %1236 = vmatprep.subr.bf16.mxu0 0
  %1237 = vmatpush1.bf16.msra.mxu0 %v852
  %1238 = vmatprep.subr.bf16.mxu0 0
  %1239 = vmatpush1.bf16.msra.mxu0 %v853
  %1240 = vmatprep.subr.bf16.mxu0 0
  %1241 = vmatpush1.bf16.msra.mxu0 %v854
  %1242 = vmatprep.mubr.bf16.mxu0 %v414
  %1243 = vmatmul.mubr.bf16.gmra.mrb[0].mxu0 %v413
  %v1244 = vpop.f32.mrb[0].mxu0
  %v1245 = vadd.f32 %v1148, %v1244
  %v1246 = vpop.f32.mrb[0].mxu0
  %v1247 = vpop.f32.mrb[0].mxu0
  %v1248 = vadd.f32 %v1151, %v1247
  %v1249 = vpop.f32.mrb[0].mxu0
  %1250 = vmatprep.mubr.bf16.mxu0 %v422
  %1251 = vmatmul.mubr.bf16.gmra.mrb[0].mxu0 %v421
  %v1252 = vpop.f32.mrb[0].mxu0
  %v1253 = vadd.f32 %v1156, %v1252
  %v1254 = vpop.f32.mrb[0].mxu0
  %v1255 = vpop.f32.mrb[0].mxu0
  %v1256 = vadd.f32 %v1159, %v1255
  %v1257 = vpop.f32.mrb[0].mxu0
  %1258 = vmatprep.mubr.bf16.mxu0 %v430
  %1259 = vmatmul.mubr.bf16.gmra.mrb[0].mxu0 %v429
  %v1260 = vpop.f32.mrb[0].mxu0
  %v1261 = vadd.f32 %v1164, %v1260
  %v1262 = vpop.f32.mrb[0].mxu0
  %v1263 = vpop.f32.mrb[0].mxu0
  %v1264 = vadd.f32 %v1167, %v1263
  %v1265 = vpop.f32.mrb[0].mxu0
  %1266 = vmatprep.mubr.bf16.mxu0 %v438
  %1267 = vmatmul.mubr.bf16.gmra.mrb[0].mxu0 %v437
  %v1268 = vpop.f32.mrb[0].mxu0
  %v1269 = vadd.f32 %v1172, %v1268
  %v1270 = vpop.f32.mrb[0].mxu0
  %v1271 = vpop.f32.mrb[0].mxu0
  %v1272 = vadd.f32 %v1175, %v1271
  %v1273 = vpop.f32.mrb[0].mxu0
  %1274 = vmatprep.mubr.bf16.mxu0 %v446
  %1275 = vmatmul.mubr.bf16.gmra.mrb[0].mxu0 %v445
  %v1276 = vpop.f32.mrb[0].mxu0
  %v1277 = vadd.f32 %v1180, %v1276
  %v1278 = vpop.f32.mrb[0].mxu0
  %v1279 = vpop.f32.mrb[0].mxu0
  %v1280 = vadd.f32 %v1183, %v1279
  %v1281 = vpop.f32.mrb[0].mxu0
  %1282 = vmatprep.mubr.bf16.mxu0 %v454
  %1283 = vmatmul.mubr.bf16.gmra.mrb[0].mxu0 %v453
  %v1284 = vpop.f32.mrb[0].mxu0
  %v1285 = vadd.f32 %v1188, %v1284
  %v1286 = vpop.f32.mrb[0].mxu0
  %v1287 = vpop.f32.mrb[0].mxu0
  %v1288 = vadd.f32 %v1191, %v1287
  %v1289 = vpop.f32.mrb[0].mxu0
  %1290 = vmatprep.mubr.bf16.mxu0 %v462
  %1291 = vmatmul.mubr.bf16.gmra.mrb[0].mxu0 %v461
  %v1292 = vpop.f32.mrb[0].mxu0
  %v1293 = vadd.f32 %v1196, %v1292
  %v1294 = vpop.f32.mrb[0].mxu0
  %v1295 = vpop.f32.mrb[0].mxu0
  %v1296 = vadd.f32 %v1199, %v1295
  %v1297 = vpop.f32.mrb[0].mxu0
  %1298 = vmatprep.mubr.bf16.mxu0 %v470
  %1299 = vmatmul.mubr.bf16.gmra.mrb[0].mxu0 %v469
  %v1300 = vpop.f32.mrb[0].mxu0
  %v1301 = vadd.f32 %v1204, %v1300
  %v1302 = vpop.f32.mrb[0].mxu0
  %v1303 = vpop.f32.mrb[0].mxu0
  %v1304 = vadd.f32 %v1207, %v1303
  %v1305 = vpop.f32.mrb[0].mxu0
  %1306 = vdwg.mxu0
  %v1307 = vmax.f32 %v1245, 0.0
  %v1308 = vmax.f32 %v1248, 0.0
  %v1309 = vmax.f32 %v1253, 0.0
  %v1310 = vmax.f32 %v1256, 0.0
  %v1311 = vmax.f32 %v1261, 0.0
  %v1312 = vmax.f32 %v1264, 0.0
  %v1313 = vmax.f32 %v1269, 0.0
  %v1314 = vmax.f32 %v1272, 0.0
  %v1315 = vmax.f32 %v1277, 0.0
  %v1316 = vmax.f32 %v1280, 0.0
  %v1317 = vmax.f32 %v1285, 0.0
  %v1318 = vmax.f32 %v1288, 0.0
  %v1319 = vmax.f32 %v1293, 0.0
  %v1320 = vmax.f32 %v1296, 0.0
  %v1321 = vmax.f32 %v1301, 0.0
  %v1322 = vmax.f32 %v1304, 0.0
  %v1323 = vmax.f32 %v1307, %v1309
  %v1324 = vmax.f32 %v1308, %v1310
  %v1325 = vmax.f32 %v1323, %v1311
  %v1326 = vmax.f32 %v1324, %v1312
  %v1327 = vmax.f32 %v1325, %v1313
  %v1328 = vmax.f32 %v1326, %v1314
  %v1329 = vmax.f32 %v1327, %v1315
  %v1330 = vmax.f32 %v1328, %v1316
  %v1331 = vmax.f32 %v1329, %v1317
  %v1332 = vmax.f32 %v1330, %v1318
  %v1333 = vmax.f32 %v1331, %v1319
  %v1334 = vmax.f32 %v1332, %v1320
  %v1335 = vmax.f32 %v1333, %v1321
  %v1336 = vmax.f32 %v1334, %v1322
  %vm1337 = vcmask 261120
  %v1338 = vsel %vm1337, %v1335, 0.0
  %1339 = vadd.xlane.f32.xlu0 %v1338
  %v1340 = vpop.xlane.xlu0 %1339
  %v1341 = vsel %vm1337, %v1336, 0.0
  %1342 = vadd.xlane.f32.xlu0 %v1341
  %v1343 = vpop.xlane.xlu0 %1342
  %v1344 = vrcp.pop 32.0
  %v1345 = vmul.f32 %v1340, %v1344
  %v1346 = vmul.f32 %v1343, %v1344
  %v1347 = vsub.f32 %v1335, %v1345
  %v1348 = vsub.f32 %v1336, %v1346
  %v1349 = vmul.f32 %v1347, %v1347
  %v1350 = vmul.f32 %v1348, %v1348
  %v1351 = vsel %vm1337, %v1349, 0.0
  %1352 = vadd.xlane.f32.xlu0 %v1351
  %v1353 = vpop.xlane.xlu0 %1352
  %v1354 = vsel %vm1337, %v1350, 0.0
  %1355 = vadd.xlane.f32.xlu0 %v1354
  %v1356 = vpop.xlane.xlu0 %1355
  %v1357 = vmul.f32 %v1353, %v1344
  %v1358 = vmul.f32 %v1356, %v1344
  %v1359 = vadd.f32 %v1357, 1e-05
  %v1360 = vadd.f32 %v1358, 1e-05
  %v1361 = vrsqrt.pop %v1359
  %v1362 = vrsqrt.pop %v1360
  %v1363 = vmul.f32 %v1347, %v1361
  %v1364 = vmul.f32 %v1348, %v1362
  %v1365 = vld [vmem:[%s2] sm:$0xff]
  %v1366 = vld [vmem:[%s2 + $0x8] sm:$0xff]
  %v1367 = vld [vmem:[%s2 + $0x10] sm:$0xff]
  %v1368 = vld [vmem:[%s2 + $0x18] sm:$0xff]
  %v1369 = vlaneseq
  %v1370 = vshrl.u32 %v1369, 7
  %v1371 = vsub.s32 1, %v1370
  %v1372 = vrot.slane %v18, %v1371
  %v1374 = vsel %vm1337, %v1363, 0
  %v1377 = vsel %vm1337, %v1364, 0
  %1379 = vmatprep.subr.mxu0 0.0
  %1380 = vmatpush1.msra.mxu0 %v1365
  %1381 = vmatprep.subr.mxu0 0.0
  %1382 = vmatpush1.msra.mxu0 %v1366
  %1383 = vmatprep.subr.mxu0 0.0
  %1384 = vmatpush1.msra.mxu0 %v1367
  %1385 = vmatprep.subr.mxu0 0.0
  %1386 = vmatpush1.msra.mxu0 %v1368
  %1387 = vmatprep.subr.mxu0 0.0
  %1388 = vmatpush1.msra.mxu0 0.0
  %1389 = vmatprep.subr.mxu0 0.0
  %1390 = vmatpush1.msra.mxu0 0.0
  %1391 = vmatprep.subr.mxu0 0.0
  %1392 = vmatpush1.msra.mxu0 0.0
  %1393 = vmatprep.subr.mxu0 0.0
  %1394 = vmatpush1.msra.mxu0 0.0
  %1395 = vmatprep.subr.mxu0 0.0
  %1396 = vmatpush1.msra.mxu0 0.0
  %1397 = vmatprep.subr.mxu0 0.0
  %1398 = vmatpush1.msra.mxu0 0.0
  %1399 = vmatprep.subr.mxu0 0.0
  %1400 = vmatpush1.msra.mxu0 0.0
  %1401 = vmatprep.subr.mxu0 0.0
  %1402 = vmatpush1.msra.mxu0 0.0
  %1403 = vmatprep.subr.mxu0 0.0
  %1404 = vmatpush1.msra.mxu0 0.0
  %1405 = vmatprep.subr.mxu0 0.0
  %1406 = vmatpush1.msra.mxu0 0.0
  %1407 = vmatprep.subr.mxu0 0.0
  %1408 = vmatpush1.msra.mxu0 0.0
  %1409 = vmatprep.subr.mxu0 0.0
  %1410 = vmatpush1.msra.mxu0 0.0
  %1411 = vmatprep.subr.mxu0 0.0
  %1412 = vmatpush1.msra.mxu0 0.0
  %1413 = vmatprep.subr.mxu0 0.0
  %1414 = vmatpush1.msra.mxu0 0.0
  %1415 = vmatprep.subr.mxu0 0.0
  %1416 = vmatpush1.msra.mxu0 0.0
  %1417 = vmatprep.subr.mxu0 0.0
  %1418 = vmatpush1.msra.mxu0 0.0
  %1419 = vmatprep.subr.mxu0 0.0
  %1420 = vmatpush1.msra.mxu0 0.0
  %1421 = vmatprep.subr.mxu0 0.0
  %1422 = vmatpush1.msra.mxu0 0.0
  %1423 = vmatprep.subr.mxu0 0.0
  %1424 = vmatpush1.msra.mxu0 0.0
  %1425 = vmatprep.subr.mxu0 0.0
  %1426 = vmatpush1.msra.mxu0 0.0
  %1427 = vmatprep.subr.mxu0 0.0
  %1428 = vmatpush1.msra.mxu0 0.0
  %1429 = vmatprep.subr.mxu0 0.0
  %1430 = vmatpush1.msra.mxu0 0.0
  %1431 = vmatprep.subr.mxu0 0.0
  %1432 = vmatpush1.msra.mxu0 0.0
  %1433 = vmatprep.subr.mxu0 0.0
  %1434 = vmatpush1.msra.mxu0 0.0
  %1435 = vmatprep.subr.mxu0 0.0
  %1436 = vmatpush1.msra.mxu0 0.0
  %1437 = vmatprep.subr.mxu0 0.0
  %1438 = vmatpush1.msra.mxu0 0.0
  %1439 = vmatprep.subr.mxu0 0.0
  %1440 = vmatpush1.msra.mxu0 0.0
  %1441 = vmatprep.subr.mxu0 0.0
  %1442 = vmatpush1.msra.mxu0 0.0
  %1443 = vmatprep.mubr.f32.mxu0 0.0
  %1444 = vmatmul.mubr.f32.gmra.mrb[0].mxu0 %v1374
  %v1445 = vpop.f32.mrb[0].mxu0
  %v1446 = vadd.f32 %v1372, %v1445
  %v1447 = vpop.f32.mrb[0].mxu0
  %1448 = vmatprep.mubr.f32.mxu0 0.0
  %1449 = vmatmul.mubr.f32.gmra.mrb[0].mxu0 %v1377
  %v1450 = vpop.f32.mrb[0].mxu0
  %v1451 = vadd.f32 %v1372, %v1450
  %v1452 = vpop.f32.mrb[0].mxu0
  %1453 = vdwg.mxu0
  %1454 = vst [vmem:[%s4] sm:$0xff] %v1446
  %1455 = vst [vmem:[%s4 + $0x8] sm:$0xff] %v1451
  // Predicated region
  $region18: #{run.1} parent=0 // pred_check
    _
  $region19: #{run.1} parent=0 // pred_check_branch
    %1457 = sbr.rel (0) target = $region21
  $region20: #{run.1} parent=0 // pred_region
    _
  $region21: #{run.1} parent=0 // pred_fallthru
    _
  // Predicated region
  $region22: #{run.1} parent=0 // pred_check
    _
  $region23: #{run.1} parent=0 // pred_check_branch
    %1459 = sbr.rel (0) target = $region25
  $region24: #{run.1} parent=0 // pred_region
    _
  $region25: #{run.1} parent=0 // pred_fallthru
    _

</llo_original>
